<compile_context>
chip_gen: v7x
topology: tpu7x:2x2x1
jax: 0.10.0
libtpu: 0.0.40
codegen_flags: <defaults>
</compile_context>

<pallas_src>
import functools

import jax
import jax.numpy as jnp
from jax.experimental import pallas as pl
from jax.experimental.pallas import tpu as pltpu


def _round_up(x, m):
    return (x + m - 1) // m * m


# ---------------------------------------------------------------------------
# mean / max pooling kernel: grid = (batch tiles, seq tiles); seq axis is a
# reduction accumulated in VMEM scratch (output block resident over that axis).
# ---------------------------------------------------------------------------
def _pool_kernel(emb_ref, mask_ref, w_ref, b_ref, out_ref, acc_ref, cnt_ref,
                 *, mode, seq_len, seq_pad, ts):
    # emb_ref : (TB, TS, Hp) bf16  token embeddings tile (pre-projection)
    # mask_ref: (TB, TS)     f32   attention mask tile (0/1; 0 on padding)
    # w_ref   : (Hp, Hp)     bf16  encoder projection weight (grid-resident)
    # b_ref   : (1, Hp)      f32   encoder projection bias   (grid-resident)
    # out_ref : (TB, Hp)     f32   pooled sentence features (resident over seq axis)
    # acc_ref : (TB, Hp)     f32   running sum / running max
    # cnt_ref : (TB, 1)      f32   running token count (mean mode only)
    s = pl.program_id(1)

    @pl.when(s == 0)
    def _init():
        if mode == "max":
            acc_ref[...] = jnp.full_like(acc_ref, -jnp.inf)
        else:
            acc_ref[...] = jnp.zeros_like(acc_ref)
            cnt_ref[...] = jnp.zeros_like(cnt_ref)

    emb = emb_ref[...]                                   # (TB, TS, Hp) bf16
    tb, tile_s, hp = emb.shape

    # Encoder hot path: bf16 matmul on the MXU with f32 accumulate, tanh on EUP.
    x2d = emb.reshape(tb * tile_s, hp)
    tok = jnp.tanh(
        jnp.dot(x2d, w_ref[...], preferred_element_type=jnp.float32) + b_ref[...]
    ).reshape(tb, tile_s, hp)                            # (TB, TS, Hp) f32

    mask = mask_ref[...]                                 # (TB, TS) f32
    mask_e = mask[:, :, None]                            # broadcast once per tile

    if mode == "max":
        # PyTorch: token_embeddings[mask == 0] = 1e-9, then max over the sequence.
        tok_m = jnp.where(mask_e == 0.0, jnp.float32(1e-9), tok)
        if seq_pad != seq_len:
            # Padded sequence positions must never win the max.
            pos = s * ts + jax.lax.broadcasted_iota(jnp.int32, (tb, tile_s, 1), 1)
            tok_m = jnp.where(pos < seq_len, tok_m, -jnp.inf)
        acc_ref[...] = jnp.maximum(acc_ref[...], jnp.max(tok_m, axis=1))
    else:  # mean
        acc_ref[...] += jnp.sum(tok * mask_e, axis=1)
        cnt_ref[...] += jnp.sum(mask, axis=1, keepdims=True)   # count, not ones_like

    @pl.when(s == pl.num_programs(1) - 1)
    def _finalize():
        if mode == "max":
            out_ref[...] = acc_ref[...]
        else:
            denom = jnp.maximum(cnt_ref[...], jnp.float32(1e-9))  # torch.clamp(min=1e-9)
            out_ref[...] = acc_ref[...] * pl.reciprocal(denom, approx=False)


# ---------------------------------------------------------------------------
# cls kernel: only token 0 is gathered / projected (no mask input, no seq loop).
# ---------------------------------------------------------------------------
def _cls_kernel(emb_ref, w_ref, b_ref, out_ref):
    out_ref[...] = jnp.tanh(
        jnp.dot(emb_ref[...], w_ref[...], preferred_element_type=jnp.float32)
        + b_ref[...]
    )


def text_repr(token_ids, attention_mask, embed_table, w, b, mode="mean"):
    """Forward pass of TextRepr with a synthetic (embedding + dense + tanh) encoder."""
    if mode not in ("mean", "max", "cls"):
        return None  # mirrors the PyTorch module's behavior for unknown modes

    B, S = token_ids.shape
    H = embed_table.shape[1]
    Hp = _round_up(H, 128)                 # lane-dense hidden dimension
    pad_h = Hp - H

    # bf16 operands for the MXU / HBM stream; accumulation & pooling stay in f32.
    w_p = w.astype(jnp.bfloat16)
    b_p = b.astype(jnp.float32)
    if pad_h:
        w_p = jnp.pad(w_p, ((0, pad_h), (0, pad_h)))
        b_p = jnp.pad(b_p, (0, pad_h))
    b2d = b_p.reshape(1, Hp)

    # Batch tile: equal to B for small batches, else 8 rows (sublane-aligned).
    TB = B if B <= 8 else 8
    Bp = _round_up(B, TB)

    compiler_params_1d = pltpu.CompilerParams(
        dimension_semantics=(pltpu.PARALLEL,),
        vmem_limit_bytes=32 * 1024 * 1024,
    )

    if mode == "cls":
        # Only token 0 is needed: gather / project / tanh just that row.
        emb0 = embed_table[token_ids[:, 0]].astype(jnp.bfloat16)     # (B, H)
        if pad_h or Bp != B:
            emb0 = jnp.pad(emb0, ((0, Bp - B), (0, pad_h)))
        out = pl.pallas_call(
            _cls_kernel,
            out_shape=jax.ShapeDtypeStruct((Bp, Hp), jnp.float32),
            grid_spec=pltpu.PrefetchScalarGridSpec(
                num_scalar_prefetch=0,
                grid=(Bp // TB,),
                in_specs=[
                    pl.BlockSpec((TB, Hp), lambda i: (i, 0)),
                    pl.BlockSpec((Hp, Hp), lambda i: (0, 0)),
                    pl.BlockSpec((1, Hp), lambda i: (0, 0)),
                ],
                out_specs=pl.BlockSpec((TB, Hp), lambda i: (i, 0)),
            ),
            compiler_params=compiler_params_1d,
        )(emb0, w_p, b2d)
        return out[:B, :H]

    # mean / max: tile the sequence axis and accumulate in VMEM scratch.
    if S <= 256:
        TS = _round_up(S, 8)
        Sp = TS
    else:
        TS = 256                           # sized for v7x's 64 MiB VMEM as well
        Sp = _round_up(S, TS)

    # Embedding gather stays in plain JAX glue.
    # TODO(synk): fuse the gather into the kernel (scalar-prefetch token_ids +
    # per-row DMA from embed_table) to remove the extra HBM round-trip of emb.
    emb = embed_table[token_ids].astype(jnp.bfloat16)                # (B, S, H)
    mask_f = attention_mask.astype(jnp.float32)                      # (B, S)
    if pad_h or Sp != S or Bp != B:
        emb = jnp.pad(emb, ((0, Bp - B), (0, Sp - S), (0, pad_h)))
        mask_f = jnp.pad(mask_f, ((0, Bp - B), (0, Sp - S)))

    kernel = functools.partial(_pool_kernel, mode=mode, seq_len=S, seq_pad=Sp, ts=TS)
    out = pl.pallas_call(
        kernel,
        out_shape=jax.ShapeDtypeStruct((Bp, Hp), jnp.float32),
        grid_spec=pltpu.PrefetchScalarGridSpec(
            num_scalar_prefetch=0,
            grid=(Bp // TB, Sp // TS),
            in_specs=[
                pl.BlockSpec((TB, TS, Hp), lambda i, j: (i, j, 0)),
                pl.BlockSpec((TB, TS), lambda i, j: (i, j)),
                pl.BlockSpec((Hp, Hp), lambda i, j: (0, 0)),
                pl.BlockSpec((1, Hp), lambda i, j: (0, 0)),
            ],
            out_specs=pl.BlockSpec((TB, Hp), lambda i, j: (i, 0)),
            scratch_shapes=[
                pltpu.VMEM((TB, Hp), jnp.float32),   # running sum / running max
                pltpu.VMEM((TB, 1), jnp.float32),    # running mask count (mean)
            ],
        ),
        compiler_params=pltpu.CompilerParams(
            dimension_semantics=(pltpu.PARALLEL, pltpu.ARBITRARY),
            vmem_limit_bytes=32 * 1024 * 1024,
        ),
    )(emb, mask_f, w_p, b2d)
    return out[:B, :H]


def _reference(token_ids, attention_mask, embed_table, w, b, mode="mean"):
    # Same bf16-rounded operands as the kernel path, f32 compute.
    emb = embed_table[token_ids].astype(jnp.bfloat16).astype(jnp.float32)
    w_f = w.astype(jnp.bfloat16).astype(jnp.float32)
    tok = jnp.tanh(jnp.einsum("bsh,hd->bsd", emb, w_f) + b[None, None, :])
    mask = attention_mask.astype(jnp.float32)[:, :, None]
    if mode == "cls":
        return tok[:, 0, :]
    if mode == "max":
        tok = jnp.where(mask == 0.0, jnp.float32(1e-9), tok)
        return jnp.max(tok, axis=1)
    sum_emb = jnp.sum(tok * mask, axis=1)
    sum_mask = jnp.clip(jnp.sum(mask * jnp.ones_like(tok), axis=1), 1e-9, None)
    return sum_emb / sum_mask


if __name__ == "__main__":
    B, S, H, V = 2, 8, 32, 100

    key = jax.random.PRNGKey(0)
    k_emb, k_w, k_b, k_tok = jax.random.split(key, 4)

    embed_table = jax.random.normal(k_emb, (V, H), dtype=jnp.float32) * 0.1
    w = jax.random.normal(k_w, (H, H), dtype=jnp.float32) * 0.1
    b = jax.random.normal(k_b, (H,), dtype=jnp.float32) * 0.1

    token_ids = jax.random.randint(k_tok, (B, S), 0, V, dtype=jnp.int32)
    attention_mask = jnp.array(
        [[1, 1, 1, 1, 1, 1, 0, 0],
         [1, 1, 1, 1, 1, 1, 1, 1]], dtype=jnp.int32
    )

    ok = True
    for mode in ("mean", "max", "cls"):
        out = text_repr(token_ids, attention_mask, embed_table, w, b, mode=mode)
        out = jax.block_until_ready(out)
        ref = _reference(token_ids, attention_mask, embed_table, w, b, mode=mode)
        if not jnp.allclose(out, ref, atol=1e-4, rtol=1e-4):
            ok = False
            print(f"mode={mode} mismatch, max err={float(jnp.max(jnp.abs(out - ref)))}")

    if ok:
        print("KERNEL_OK")
</pallas_src>

<mosaic_0001>
module attributes {stable_mosaic.version = 11 : i64} {
  func.func @_pool_kernel(%arg0: i32, %arg1: i32, %arg2: memref<2x8x128xbf16, #tpu.memory_space<vmem>>, %arg3: memref<2x8xf32, #tpu.memory_space<vmem>>, %arg4: memref<128x128xbf16, #tpu.memory_space<vmem>>, %arg5: memref<1x128xf32, #tpu.memory_space<vmem>>, %arg6: memref<2x128xf32, #tpu.memory_space<vmem>>, %arg7: memref<2x128xf32, #tpu.memory_space<vmem>>, %arg8: memref<2x1xf32, #tpu.memory_space<vmem>>) attributes {dimension_semantics = [#tpu.dimension_semantics<parallel>, #tpu.dimension_semantics<arbitrary>], iteration_bounds = array<i64: 1, 1>, scalar_prefetch = 0 : i64, scratch_operands = 2 : i64, tpu.core_type = #tpu.core_type<tc>, window_params = [{transform_indices = @transform_0, window_bounds = array<i64: 2, 8, 128>}, {transform_indices = @transform_1, window_bounds = array<i64: 2, 8>}, {pipeline_mode = #tpu.pipeline_mode<synchronous>, transform_indices = @transform_2, window_bounds = array<i64: 128, 128>}, {pipeline_mode = #tpu.pipeline_mode<synchronous>, transform_indices = @transform_3, window_bounds = array<i64: 1, 128>}, {transform_indices = @transform_4, window_bounds = array<i64: 2, 128>}]} {
    %c0_i32 = arith.constant 0 : i32
    %0 = arith.cmpi eq, %arg1, %c0_i32 : i32
    %1 = arith.extui %0 : i1 to i32
    %c0_i32_0 = arith.constant 0 : i32
    %2 = arith.cmpi ne, %1, %c0_i32_0 : i32
    scf.if %2 {
      %cst_21 = arith.constant 0.000000e+00 : f32
      %28 = vector.broadcast %cst_21 : f32 to vector<2x128xf32>
      %c0_22 = arith.constant 0 : index
      %c0_23 = arith.constant 0 : index
      %29 = vector.load %arg7[%c0_22, %c0_23] : memref<2x128xf32, #tpu.memory_space<vmem>>, vector<2x128xf32>
      tpu.vector_store %arg7[%c0_22, %c0_23], %28 {strides = array<i32>} : memref<2x128xf32, #tpu.memory_space<vmem>>, vector<2x128xf32>,
      %cst_24 = arith.constant 0.000000e+00 : f32
      %30 = vector.broadcast %cst_24 : f32 to vector<2x1xf32>
      %c0_25 = arith.constant 0 : index
      %c0_26 = arith.constant 0 : index
      %31 = vector.load %arg8[%c0_25, %c0_26] : memref<2x1xf32, #tpu.memory_space<vmem>>, vector<2x1xf32>
      tpu.vector_store %arg8[%c0_25, %c0_26], %30 {strides = array<i32>} : memref<2x1xf32, #tpu.memory_space<vmem>>, vector<2x1xf32>,
    } else {
    }
    %c0 = arith.constant 0 : index
    %c0_1 = arith.constant 0 : index
    %c0_2 = arith.constant 0 : index
    %3 = vector.load %arg2[%c0, %c0_1, %c0_2] : memref<2x8x128xbf16, #tpu.memory_space<vmem>>, vector<2x8x128xbf16>
    %4 = vector.shape_cast %3 : vector<2x8x128xbf16> to vector<16x128xbf16>
    %c0_3 = arith.constant 0 : index
    %c0_4 = arith.constant 0 : index
    %5 = vector.load %arg4[%c0_3, %c0_4] : memref<128x128xbf16, #tpu.memory_space<vmem>>, vector<128x128xbf16>
    %cst = arith.constant dense<0.000000e+00> : vector<16x128xf32>
    %6 = tpu.matmul %4, %5, %cst {dimension_numbers = #tpu.dot_dimension_numbers<[1], [0], [0], [1], [0, 0, 1, 1], [], []>} : vector<16x128xbf16>, vector<128x128xbf16>, vector<16x128xf32> -> vector<16x128xf32>
    %c0_5 = arith.constant 0 : index
    %c0_6 = arith.constant 0 : index
    %7 = vector.load %arg5[%c0_5, %c0_6] : memref<1x128xf32, #tpu.memory_space<vmem>>, vector<1x128xf32>
    %8 = vector.broadcast %7 : vector<1x128xf32> to vector<16x128xf32>
    %9 = arith.addf %6, %8 : vector<16x128xf32>
    %10 = math.tanh %9 : vector<16x128xf32>
    %11 = vector.shape_cast %10 : vector<16x128xf32> to vector<2x8x128xf32>
    %c0_7 = arith.constant 0 : index
    %c0_8 = arith.constant 0 : index
    %12 = vector.load %arg3[%c0_7, %c0_8] : memref<2x8xf32, #tpu.memory_space<vmem>>, vector<2x8xf32>
    %13 = vector.shape_cast %12 : vector<2x8xf32> to vector<2x8x1xf32>
    %c0_9 = arith.constant 0 : index
    %c0_10 = arith.constant 0 : index
    %14 = vector.load %arg7[%c0_9, %c0_10] : memref<2x128xf32, #tpu.memory_space<vmem>>, vector<2x128xf32>
    %15 = vector.broadcast %13 : vector<2x8x1xf32> to vector<2x8x128xf32>
    %16 = arith.mulf %11, %15 : vector<2x8x128xf32>
    %cst_11 = arith.constant dense<0.000000e+00> : vector<2x128xf32>
    %17 = vector.multi_reduction <add>, %16, %cst_11 [1] : vector<2x8x128xf32> to vector<2x128xf32>
    %18 = arith.addf %14, %17 : vector<2x128xf32>
    %c0_12 = arith.constant 0 : index
    %c0_13 = arith.constant 0 : index
    %19 = vector.load %arg7[%c0_12, %c0_13] : memref<2x128xf32, #tpu.memory_space<vmem>>, vector<2x128xf32>
    tpu.vector_store %arg7[%c0_12, %c0_13], %18 {strides = array<i32>} : memref<2x128xf32, #tpu.memory_space<vmem>>, vector<2x128xf32>,
    %c0_14 = arith.constant 0 : index
    %c0_15 = arith.constant 0 : index
    %20 = vector.load %arg8[%c0_14, %c0_15] : memref<2x1xf32, #tpu.memory_space<vmem>>, vector<2x1xf32>
    %cst_16 = arith.constant dense<0.000000e+00> : vector<2xf32>
    %21 = vector.multi_reduction <add>, %12, %cst_16 [1] : vector<2x8xf32> to vector<2xf32>
    %22 = vector.shape_cast %21 : vector<2xf32> to vector<2x1xf32>
    %23 = arith.addf %20, %22 : vector<2x1xf32>
    %c0_17 = arith.constant 0 : index
    %c0_18 = arith.constant 0 : index
    %24 = vector.load %arg8[%c0_17, %c0_18] : memref<2x1xf32, #tpu.memory_space<vmem>>, vector<2x1xf32>
    tpu.vector_store %arg8[%c0_17, %c0_18], %23 {strides = array<i32>} : memref<2x1xf32, #tpu.memory_space<vmem>>, vector<2x1xf32>,
    %c0_i32_19 = arith.constant 0 : i32
    %25 = arith.cmpi eq, %arg1, %c0_i32_19 : i32
    %26 = arith.extui %25 : i1 to i32
    %c0_i32_20 = arith.constant 0 : i32
    %27 = arith.cmpi ne, %26, %c0_i32_20 : i32
    scf.if %27 {
      %c0_21 = arith.constant 0 : index
      %c0_22 = arith.constant 0 : index
      %28 = vector.load %arg8[%c0_21, %c0_22] : memref<2x1xf32, #tpu.memory_space<vmem>>, vector<2x1xf32>
      %cst_23 = arith.constant 9.99999971E-10 : f32
      %29 = vector.broadcast %cst_23 : f32 to vector<2x1xf32>
      %30 = arith.maximumf %28, %29 : vector<2x1xf32>
      %c0_24 = arith.constant 0 : index
      %c0_25 = arith.constant 0 : index
      %31 = vector.load %arg7[%c0_24, %c0_25] : memref<2x128xf32, #tpu.memory_space<vmem>>, vector<2x128xf32>
      %32 = tpu.reciprocal %30 : vector<2x1xf32> -> vector<2x1xf32>
      %33 = vector.broadcast %32 : vector<2x1xf32> to vector<2x128xf32>
      %34 = arith.mulf %31, %33 : vector<2x128xf32>
      %c0_26 = arith.constant 0 : index
      %c0_27 = arith.constant 0 : index
      %35 = vector.load %arg6[%c0_26, %c0_27] : memref<2x128xf32, #tpu.memory_space<vmem>>, vector<2x128xf32>
      tpu.vector_store %arg6[%c0_26, %c0_27], %34 {strides = array<i32>} : memref<2x128xf32, #tpu.memory_space<vmem>>, vector<2x128xf32>,
    } else {
    }
    return
  }
  func.func @transform_0(%arg0: i32, %arg1: i32) -> (i32, i32, i32) {
    %c0_i32 = arith.constant 0 : i32
    %c0_i32_0 = arith.constant 0 : i32
    return %arg0, %arg1, %c0_i32 : i32, i32, i32
  }
  func.func @transform_1(%arg0: i32, %arg1: i32) -> (i32, i32) {
    %c0_i32 = arith.constant 0 : i32
    return %arg0, %arg1 : i32, i32
  }
  func.func @transform_2(%arg0: i32, %arg1: i32) -> (i32, i32) {
    %c0_i32 = arith.constant 0 : i32
    %c0_i32_0 = arith.constant 0 : i32
    %c0_i32_1 = arith.constant 0 : i32
    return %c0_i32, %c0_i32_0 : i32, i32
  }
  func.func @transform_3(%arg0: i32, %arg1: i32) -> (i32, i32) {
    %c0_i32 = arith.constant 0 : i32
    %c0_i32_0 = arith.constant 0 : i32
    %c0_i32_1 = arith.constant 0 : i32
    return %c0_i32, %c0_i32_0 : i32, i32
  }
  func.func @transform_4(%arg0: i32, %arg1: i32) -> (i32, i32) {
    %c0_i32 = arith.constant 0 : i32
    %c0_i32_0 = arith.constant 0 : i32
    return %arg0, %c0_i32 : i32, i32
  }
}

</mosaic_0001>

<llo_original>
// kernel: tpu_custom_call.1
$region0: #{tpu_custom_call.1}
  #allocation0 [shape = 'u32[]', space=smem, size = 0x4, offset = 0x4, fixed_abs, tag = 'smem constant byte address 0x4 - core index']
  #allocation1 [shape = 'u32[144,128]{1,0:T(1,128)}', space=vmem, size = 0x12000, scoped, tag = 'internal scratch']
  #allocation2 [shape = 'f32[2,128]{1,0:T(2,128)}', space=vmem, size = 0x400, scoped, tag = 'scratch operand']
  #allocation3 [shape = 'f32[2,1]{1,0:T(2,128)}', space=vmem, size = 0x400, scoped, tag = 'scratch operand']
  %s0 = inlined_call_operand.hbm [shape: bf16[2,8,128], index: 0, kind: input, shape index: {}]
  %s1 = inlined_call_operand.vmem [shape: f32[2,8], index: 1, kind: input, shape index: {}]
  %s2 = inlined_call_operand.hbm [shape: bf16[128,128], index: 2, kind: input, shape index: {}]
  %s3 = inlined_call_operand.vmem [shape: f32[1,128], index: 3, kind: input, shape index: {}]
  %s4 = inlined_call_operand.hbm [shape: f32[2,128], index: 4, kind: output, shape index: {}]
  %s5 = sld [smem:[#allocation0]]
  $region42: #{tpu_custom_call.1} parent=0
    _
  %s7 = ssub.s32 1, %s5
  %s8 = scalar_select 0, %s7, %s5
  $region1: #{tpu_custom_call.1} parent=0
    #allocation4 [shape = 'u8[4096]{0}', space=vmem, size = 0x1000, scoped, tag = 'input window, operand 0, single buffered']
    #allocation5 [shape = 's32[1]{0}', space=sflag, size = 0x4, scoped, tag = 'scoped memory for tpu_custom_call.1']
    #allocation6 [shape = 's32[1]{0}', space=sflag, size = 0x4, scoped, tag = 'scoped memory for tpu_custom_call.1']
    #allocation7 [shape = 'u8[32768]{0}', space=vmem, size = 0x8000, scoped, tag = 'input window, operand 2, single buffered']
    #allocation8 [shape = 's32[1]{0}', space=sflag, size = 0x4, scoped, tag = 'scoped memory for tpu_custom_call.1']
    #allocation9 [shape = 'u8[1024]{0}', space=vmem, size = 0x400, scoped, tag = 'output window, operand 0, single buffered']
    %9 = vsyncpa [#allocation5], 0
    %10 = vsyncpa [#allocation8], 0
    %11 = vsyncpa [#allocation6], 0
    // Predicated region
    $region2: #{tpu_custom_call.1} parent=1 // pred_check
      _
    $region3: #{tpu_custom_call.1} parent=1 // pred_check_branch
      %13 = sbr.rel (0) target = $region5
    $region4: #{tpu_custom_call.1} parent=1 // pred_region
      %s15 = ssub.s32 128, 128
      %16 = vsyncadd [#allocation5], %s15
      %s17 = sshll.u32 [#allocation4], 4
      %s18 = int_to_ptr.vmem [resolvable:$true] %s17
      %23 = dma.hbm_to_vmem [thread:$0]  %s0, 128, %s18, [#allocation5], 64, 64, 4
    $region5: #{tpu_custom_call.1} parent=1 // pred_fallthru
      _
    // Predicated region
    $region6: #{tpu_custom_call.1} parent=1 // pred_check
      _
    $region7: #{tpu_custom_call.1} parent=1 // pred_check_branch
      %25 = sbr.rel (0) target = $region9
    $region8: #{tpu_custom_call.1} parent=1 // pred_region
      _
    $region9: #{tpu_custom_call.1} parent=1 // pred_fallthru
      _
    // Predicated region
    $region10: #{tpu_custom_call.1} parent=1 // pred_check
      _
    $region11: #{tpu_custom_call.1} parent=1 // pred_check_branch
      %27 = sbr.rel (0) target = $region13
    $region12: #{tpu_custom_call.1} parent=1 // pred_region
      %s29 = ssub.s32 1024, 1024
      %30 = vsyncadd [#allocation8], %s29
      %s31 = sshll.u32 [#allocation7], 4
      %s32 = int_to_ptr.vmem [resolvable:$true] %s31
      %37 = dma.hbm_to_vmem [thread:$0]  %s2, 1024, %s32, [#allocation8], 64, 64, 4
    $region13: #{tpu_custom_call.1} parent=1 // pred_fallthru
      _
    // Predicated region
    $region14: #{tpu_custom_call.1} parent=1 // pred_check
      _
    $region15: #{tpu_custom_call.1} parent=1 // pred_check_branch
      %39 = sbr.rel (0) target = $region17
    $region16: #{tpu_custom_call.1} parent=1 // pred_region
      _
    $region17: #{tpu_custom_call.1} parent=1 // pred_fallthru
      _
    // Predicated region
    $region18: #{tpu_custom_call.1} parent=1 // pred_check
      _
    $region19: #{tpu_custom_call.1} parent=1 // pred_check_branch
      %41 = sbr.rel (0) target = $region21
    $region20: #{tpu_custom_call.1} parent=1 // pred_region
      %42 = dma.done [#allocation5], 128
    $region21: #{tpu_custom_call.1} parent=1 // pred_fallthru
      _
    // Predicated region
    $region22: #{tpu_custom_call.1} parent=1 // pred_check
      _
    $region23: #{tpu_custom_call.1} parent=1 // pred_check_branch
      %44 = sbr.rel (0) target = $region25
    $region24: #{tpu_custom_call.1} parent=1 // pred_region
      %45 = dma.done [#allocation8], 1024
    $region25: #{tpu_custom_call.1} parent=1 // pred_fallthru
      _
    %p47 = scmp.eq.s32.totalorder 0, 0
    // Predicated region
    $region26: #{tpu_custom_call.1} parent=1 // pred_check
      %p48 = pneg %p47
    $region27: #{tpu_custom_call.1} parent=1 // pred_check_branch
      %50 = sbr.rel (%p48) target = $region29
    $region28: #{tpu_custom_call.1} parent=1 // pred_region
      %51 = vst [vmem:[#allocation2] sm:$0x3] 0.0
      %vm52 = vcmask 1024
      %53 = vst.msk [vmem:[#allocation3] sm:$0x3] %vm52, 0.0
    $region29: #{tpu_custom_call.1} parent=1 // pred_fallthru
      _
    %v54 = vld [vmem:[#allocation4] sm:$0xf]
    %v55 = vld [vmem:[#allocation4 + $0x4] sm:$0xf]
    %v56 = vld [vmem:[#allocation7] sm:$0xf]
    %v57 = vld [vmem:[#allocation7 + $0x4] sm:$0xf]
    %v58 = vld [vmem:[#allocation7 + $0x8] sm:$0xf]
    %v59 = vld [vmem:[#allocation7 + $0xc] sm:$0xf]
    %v60 = vld [vmem:[#allocation7 + $0x10] sm:$0xf]
    %v61 = vld [vmem:[#allocation7 + $0x14] sm:$0xf]
    %v62 = vld [vmem:[#allocation7 + $0x18] sm:$0xf]
    %v63 = vld [vmem:[#allocation7 + $0x1c] sm:$0xf]
    %v64 = vld [vmem:[#allocation7 + $0x20] sm:$0xf]
    %v65 = vld [vmem:[#allocation7 + $0x24] sm:$0xf]
    %v66 = vld [vmem:[#allocation7 + $0x28] sm:$0xf]
    %v67 = vld [vmem:[#allocation7 + $0x2c] sm:$0xf]
    %v68 = vld [vmem:[#allocation7 + $0x30] sm:$0xf]
    %v69 = vld [vmem:[#allocation7 + $0x34] sm:$0xf]
    %v70 = vld [vmem:[#allocation7 + $0x38] sm:$0xf]
    %v71 = vld [vmem:[#allocation7 + $0x3c] sm:$0xf]
    %v72 = vld [vmem:[%s3] sm:$0x1]
    %v74 = vlaneseq
    %v75 = vshrl.u32 %v74, 7
    %v76 = vsub.s32 0, %v75
    %v77 = vrot.slane %v72, %v76
    %v81 = vunpack.c.l.b16 %v54
    %v82 = vunpack.c.l.b16 %v55
    %v83 = vpack.c.b16 %v82, %v81
    %v101 = vunpack.c.l.b16 %v56
    %v102 = vunpack.c.l.b16 %v57
    %v103 = vunpack.c.l.b16 %v58
    %v104 = vunpack.c.l.b16 %v59
    %v105 = vunpack.c.l.b16 %v60
    %v106 = vunpack.c.l.b16 %v61
    %v107 = vunpack.c.l.b16 %v62
    %v108 = vunpack.c.l.b16 %v63
    %v109 = vunpack.c.l.b16 %v64
    %v110 = vunpack.c.l.b16 %v65
    %v111 = vunpack.c.l.b16 %v66
    %v112 = vunpack.c.l.b16 %v67
    %v113 = vunpack.c.l.b16 %v68
    %v114 = vunpack.c.l.b16 %v69
    %v115 = vunpack.c.l.b16 %v70
    %v116 = vunpack.c.l.b16 %v71
    %v117 = vpack.c.b16 %v102, %v101
    %v118 = vpack.c.b16 %v104, %v103
    %v119 = vpack.c.b16 %v106, %v105
    %v120 = vpack.c.b16 %v108, %v107
    %v121 = vpack.c.b16 %v110, %v109
    %v122 = vpack.c.b16 %v112, %v111
    %v123 = vpack.c.b16 %v114, %v113
    %v124 = vpack.c.b16 %v116, %v115
    %133 = vmatprep.subr.bf16.mxu0 0
    %134 = vmatpush1.bf16.msra.mxu0 %v117
    %135 = vmatprep.subr.bf16.mxu0 0
    %136 = vmatpush1.bf16.msra.mxu0 %v118
    %137 = vmatprep.subr.bf16.mxu0 0
    %138 = vmatpush1.bf16.msra.mxu0 %v119
    %139 = vmatprep.subr.bf16.mxu0 0
    %140 = vmatpush1.bf16.msra.mxu0 %v120
    %141 = vmatprep.subr.bf16.mxu0 0
    %142 = vmatpush1.bf16.msra.mxu0 %v121
    %143 = vmatprep.subr.bf16.mxu0 0
    %144 = vmatpush1.bf16.msra.mxu0 %v122
    %145 = vmatprep.subr.bf16.mxu0 0
    %146 = vmatpush1.bf16.msra.mxu0 %v123
    %147 = vmatprep.subr.bf16.mxu0 0
    %148 = vmatpush1.bf16.msra.mxu0 %v124
    %149 = vmatprep.subr.bf16.mxu0 0
    %150 = vmatpush1.bf16.msra.mxu0 0
    %151 = vmatprep.subr.bf16.mxu0 0
    %152 = vmatpush1.bf16.msra.mxu0 0
    %153 = vmatprep.subr.bf16.mxu0 0
    %154 = vmatpush1.bf16.msra.mxu0 0
    %155 = vmatprep.subr.bf16.mxu0 0
    %156 = vmatpush1.bf16.msra.mxu0 0
    %157 = vmatprep.subr.bf16.mxu0 0
    %158 = vmatpush1.bf16.msra.mxu0 0
    %159 = vmatprep.subr.bf16.mxu0 0
    %160 = vmatpush1.bf16.msra.mxu0 0
    %161 = vmatprep.subr.bf16.mxu0 0
    %162 = vmatpush1.bf16.msra.mxu0 0
    %163 = vmatprep.subr.bf16.mxu0 0
    %164 = vmatpush1.bf16.msra.mxu0 0
    %165 = vmatprep.mubr.bf16.mxu0 0
    %166 = vmatmul.mubr.bf16.gmra.mrb[0].mxu0 %v83
    %v167 = vpop.f32.mrb[0].mxu0
    %v168 = vadd.f32 %v77, %v167
    %v169 = vpop.f32.mrb[0].mxu0
    %v170 = vpop.f32.mrb[0].mxu0
    %v171 = vadd.f32 %v77, %v170
    %v172 = vpop.f32.mrb[0].mxu0
    %173 = vdwg.mxu0
    %v174 = vtanh.pop %v168
    %v175 = vtanh.pop %v171
    %v176 = vld [vmem:[%s1] sm:$0x3]
    %v177 = vlaneseq
    %v178 = vshrl.u32 %v177, 7
    %v179 = vsub.s32 0, %v178
    %v180 = vrot.slane %v176, %v179
    %182 = vbcast.lane.b32.xlu0 %v180, 256
    %v183 = vpop.permute.xlu0 %182
    %v184 = vlaneseq
    %v185 = vshrl.u32 %v184, 7
    %v186 = vsub.s32 1, %v185
    %v187 = vrot.slane %v176, %v186
    %189 = vbcast.lane.b32.xlu0 %v187, 256
    %v190 = vpop.permute.xlu0 %189
    %v191 = vld [vmem:[#allocation2] sm:$0x3]
    %v192 = vmul.f32 %v174, %v183
    %v193 = vmul.f32 %v175, %v190
    %v194 = vrot.slane %v192, 4
    %v195 = vadd.f32 %v192, %v194
    %v196 = vrot.slane %v195, 2
    %v197 = vadd.f32 %v195, %v196
    %v198 = vrot.slane %v197, 1
    %v199 = vadd.f32 %v197, %v198
    %v200 = vrot.slane %v193, 4
    %v201 = vadd.f32 %v193, %v200
    %v202 = vrot.slane %v201, 2
    %v203 = vadd.f32 %v201, %v202
    %v204 = vrot.slane %v203, 1
    %v205 = vadd.f32 %v203, %v204
    %vm208 = vcmask 1041409
    %v209 = vsel %vm208, %v205, %v199
    %v211 = vadd.f32 %v191, %v209
    %212 = vst [vmem:[#allocation2] sm:$0x3] %v211
    %v213 = vld [vmem:[#allocation3] sm:$0x3]
    %vm214 = vcmask 58368
    %v215 = vsel %vm214, %v176, 0.0
    %216 = vadd.xlane.f32.xlu0 %v215
    %v217 = vpop.xlane.xlu0 %216
    %v218 = vadd.f32 %v213, %v217
    %vm219 = vcmask 1024
    %220 = vst.msk [vmem:[#allocation3] sm:$0x3] %vm219, %v218
    // Predicated region
    $region30: #{tpu_custom_call.1} parent=1 // pred_check
      %p221 = pneg %p47
    $region31: #{tpu_custom_call.1} parent=1 // pred_check_branch
      %223 = sbr.rel (%p221) target = $region33
    $region32: #{tpu_custom_call.1} parent=1 // pred_region
      %v224 = vld [vmem:[#allocation3] sm:$0x3]
      %v225 = vmax.f32 %v224, 1e-09
      %v226 = vld [vmem:[#allocation2] sm:$0x3]
      %v227 = vrcp.pop %v225
      %229 = vset.pattern.permute.xlu0 0
      %230 = vperm.xlu0 %229, %v227
      %v231 = vpop.permute.xlu0 %230
      %v233 = vmul.f32 %v226, %v231
      %234 = vst [vmem:[#allocation9] sm:$0x3] %v233
    $region33: #{tpu_custom_call.1} parent=1 // pred_fallthru
      _
    // Predicated region
    $region34: #{tpu_custom_call.1} parent=1 // pred_check
      _
    $region35: #{tpu_custom_call.1} parent=1 // pred_check_branch
      %236 = sbr.rel (0) target = $region37
    $region36: #{tpu_custom_call.1} parent=1 // pred_region
      %s238 = ssub.s32 32, 32
      %239 = vsyncadd [#allocation6], %s238
      %s241 = sshll.u32 [#allocation9], 4
      %s242 = int_to_ptr.vmem [resolvable:$true] %s241
      %244 = dma.vmem_to_hbm [thread:$0]  %s242, 32, %s4, [#allocation6]
    $region37: #{tpu_custom_call.1} parent=1 // pred_fallthru
      _
    // Predicated region
    $region38: #{tpu_custom_call.1} parent=1 // pred_check
      _
    $region39: #{tpu_custom_call.1} parent=1 // pred_check_branch
      %246 = sbr.rel (0) target = $region41
    $region40: #{tpu_custom_call.1} parent=1 // pred_region
      %247 = dma.done [#allocation6], 32
    $region41: #{tpu_custom_call.1} parent=1 // pred_fallthru
      _
    %248 = vsyncpa [#allocation5], 1
    %249 = vsyncpa [#allocation8], 1
    %250 = vsyncpa [#allocation6], 1

</llo_original>
